<compile_context>
chip_gen: v7x
topology: tpu7x:2x2x1
jax: 0.10.0
libtpu: 0.0.40
codegen_flags: <defaults>
</compile_context>

<pallas_src>
import functools

import jax
import jax.numpy as jnp
from jax.experimental import pallas as pl
from jax.experimental.pallas import tpu as pltpu


def _round_up(a: int, b: int) -> int:
    return (a + b - 1) // b * b


def _triplet_kernel(xf_ref, lc_ref, lr_ref, out_ref, row_ref, acc_ref, *,
                    n: int,
                    margin,
                    distance_metric: str,
                    normalize_feature: bool,
                    hard_factor: float):
    i = pl.program_id(0)
    num_tiles = pl.num_programs(0)
    n_pad, d = xf_ref.shape
    tm = lc_ref.shape[0]
    padded = n_pad > n
    use_raw_sq = (distance_metric == "euclidean") and (not normalize_feature)

    neg_inf = jnp.float32(-jnp.inf)
    pos_inf = jnp.float32(jnp.inf)

    # ---- one-time init: per-column row vector (squared norms or inverse
    #      norms) and zeroed accumulator -------------------------------------
    @pl.when(i == 0)
    def _init():
        xf32 = xf_ref[...].astype(jnp.float32)
        # (1, D) @ (N, D)^T-contraction -> (1, N) squared norms, no transpose.
        sq = jax.lax.dot_general(
            jnp.ones((1, d), jnp.float32), xf32 * xf32,
            dimension_numbers=(((1,), (1,)), ((), ())),
            preferred_element_type=jnp.float32)
        if use_raw_sq:
            row_ref[...] = sq
        else:
            # 1 / max(||x||, 1e-12) == rsqrt(max(||x||^2, 1e-24))
            row_ref[...] = jax.lax.rsqrt(jnp.maximum(sq, 1e-24))
        acc_ref[...] = jnp.zeros_like(acc_ref)

    # ---- row tile of features (sliced from the resident matrix) ------------
    start = i * tm
    if tm % 8 == 0:
        start = pl.multiple_of(start, 8)
    xt = xf_ref[pl.ds(start, tm), :]                      # (tm, d), native dtype

    # Gram tile on the MXU: contract dim 1 against dim 1 (no materialized x.T).
    gram = jax.lax.dot_general(
        xt, xf_ref[...],
        dimension_numbers=(((1,), (1,)), ((), ())),
        preferred_element_type=jnp.float32)               # (tm, n_pad) f32

    xt32 = xt.astype(jnp.float32)
    sq_col = jnp.sum(xt32 * xt32, axis=1, keepdims=True)  # (tm, 1)

    # ---- masks --------------------------------------------------------------
    lbl_c = lc_ref[...]                                   # (tm, 1) int32
    lbl_r = lr_ref[...]                                   # (1, n_pad) int32
    is_pos = lbl_c == lbl_r                               # (tm, n_pad)

    row_ids = i * tm + jax.lax.broadcasted_iota(jnp.int32, (tm, 1), 0)
    col_ids = jax.lax.broadcasted_iota(jnp.int32, (1, n_pad), 1)
    self_mask = row_ids == col_ids                        # (tm, n_pad)

    if padded:
        col_valid = col_ids < n                           # static bound
        pos_valid = jnp.logical_and(is_pos, col_valid)
        neg_excl = jnp.logical_or(is_pos, jnp.logical_not(col_valid))
    else:
        pos_valid = is_pos
        neg_excl = is_pos

    # Single N-wide integer reduction: positives per row (includes self).
    pos_count = jnp.sum(pos_valid.astype(jnp.int32), axis=1, keepdims=True)
    has_pos = pos_count > 1
    has_neg = pos_count < n

    # ---- distances + mining --------------------------------------------------
    if distance_metric == "euclidean":
        if normalize_feature:
            inv_c = jax.lax.rsqrt(jnp.maximum(sq_col, 1e-24))        # (tm, 1)
            sim = gram * inv_c * row_ref[...]                        # (tm, n_pad)
            d2 = 2.0 - 2.0 * sim                                     # ||xh_i - xh_j||^2
        else:
            d2 = (row_ref[...] - 2.0 * gram) + sq_col                # squared dists
        # Mine on squared distances; defer clamp + sqrt to (tm, 1) vectors.
        ap2 = jnp.max(
            jnp.where(jnp.logical_and(pos_valid, jnp.logical_not(self_mask)),
                      d2, neg_inf),
            axis=1, keepdims=True)
        an2 = jnp.min(jnp.where(neg_excl, pos_inf, d2), axis=1, keepdims=True)
        dist_ap = jnp.where(has_pos, jnp.sqrt(jnp.maximum(ap2, 1e-12)), 0.0)
        dist_an = jnp.where(has_neg, jnp.sqrt(jnp.maximum(an2, 1e-12)), pos_inf)
    elif distance_metric == "cosine":
        inv_c = jax.lax.rsqrt(jnp.maximum(sq_col, 1e-24))
        sim = gram * inv_c * row_ref[...]
        # dist = 1 - sim; mine on sim directly (max dist <-> min sim, etc.)
        sim_p = jnp.min(
            jnp.where(jnp.logical_and(pos_valid, jnp.logical_not(self_mask)),
                      sim, pos_inf),
            axis=1, keepdims=True)
        sim_n = jnp.max(jnp.where(neg_excl, neg_inf, sim), axis=1, keepdims=True)
        dist_ap = jnp.where(has_pos, 1.0 - sim_p, 0.0)
        dist_an = jnp.where(has_neg, 1.0 - sim_n, pos_inf)
    else:
        raise ValueError(f"Unsupported distance metric: {distance_metric}")

    if hard_factor and hard_factor > 0.0:
        dist_ap = dist_ap * (1.0 + hard_factor)
        dist_an = dist_an * (1.0 - hard_factor)

    # ---- ranking loss per row ------------------------------------------------
    if margin is not None:
        # MarginRankingLoss(margin)(dist_an, dist_ap, y=1)
        per_row = jnp.maximum(dist_ap - dist_an + margin, 0.0)       # (tm, 1)
    else:
        # SoftMarginLoss(dist_an - dist_ap, y=1) = log(1 + exp(-(an - ap)))
        per_row = jnp.log1p(jnp.exp(dist_ap - dist_an))
    if padded:
        per_row = jnp.where(row_ids < n, per_row, 0.0)

    acc_ref[...] = acc_ref[...] + jnp.sum(per_row, axis=0, keepdims=True)

    @pl.when(i == num_tiles - 1)
    def _finalize():
        out_ref[0, 0] = acc_ref[0, 0] * jnp.float32(1.0 / n)


def triplet_loss(global_feat, labels, *,
                 margin=0.3,
                 distance_metric: str = "euclidean",
                 normalize_feature: bool = False,
                 hard_factor: float = 0.0,
                 block_rows=None):
    """Pallas equivalent of TripletLoss.forward (returns scalar f32)."""
    if distance_metric not in ("euclidean", "cosine"):
        raise ValueError(f"Unsupported distance metric: {distance_metric}")

    n, d = global_feat.shape
    if n < 2:
        return jnp.float32(0.0)

    # Row-tile size: single tile for small batches, 256-row tiles otherwise.
    if block_rows is None:
        tm = n if n <= 256 else 256
    else:
        tm = min(_round_up(max(int(block_rows), 1), 8), _round_up(n, 8))
    n_pad = _round_up(n, tm)
    num_tiles = n_pad // tm

    lbl = jnp.asarray(labels, jnp.int32).reshape(-1)
    feat = global_feat                       # no redundant cast; kernel handles dtype
    if n_pad != n:
        feat = jnp.pad(feat, ((0, n_pad - n), (0, 0)))
        lbl = jnp.pad(lbl, (0, n_pad - n), constant_values=-1)

    lbl_col = lbl.reshape(n_pad, 1)          # reshapes are free in the wrapper
    lbl_row = lbl.reshape(1, n_pad)

    kernel = functools.partial(
        _triplet_kernel,
        n=n,
        margin=margin,
        distance_metric=distance_metric,
        normalize_feature=normalize_feature,
        hard_factor=hard_factor,
    )

    out = pl.pallas_call(
        kernel,
        grid=(num_tiles,),
        out_shape=jax.ShapeDtypeStruct((1, 1), jnp.float32),
        in_specs=[
            pl.BlockSpec((n_pad, d), lambda i: (0, 0)),   # full features (resident)
            pl.BlockSpec((tm, 1), lambda i: (i, 0)),      # labels, column layout (tiled)
            pl.BlockSpec((1, n_pad), lambda i: (0, 0)),   # labels, row layout (resident)
        ],
        out_specs=pl.BlockSpec(memory_space=pltpu.MemorySpace.SMEM),
        scratch_shapes=[
            pltpu.VMEM((1, n_pad), jnp.float32),          # column sq-norms / inv-norms
            pltpu.VMEM((1, 1), jnp.float32),              # running hinge-sum accumulator
        ],
        compiler_params=pltpu.CompilerParams(
            dimension_semantics=("arbitrary",),           # scalar accumulated across tiles
        ),
    )(feat, lbl_col, lbl_row)

    # Single-class / no-negative batches come out as exactly 0 from the kernel,
    # so no wrapper-side unique-label guard is needed.
    return out[0, 0]


# ----------------------------------------------------------------------------
# Pure-JAX reference mirroring the PyTorch module (for verification).
# ----------------------------------------------------------------------------
def _reference_triplet_loss(feat, labels, margin=0.3,
                            distance_metric="euclidean",
                            normalize_feature=False,
                            hard_factor=0.0):
    feat = jnp.asarray(feat, jnp.float32)
    labels = jnp.asarray(labels, jnp.int32)
    n = feat.shape[0]
    if normalize_feature:
        nrm = jnp.sqrt(jnp.sum(feat * feat, axis=1, keepdims=True))
        feat = feat / jnp.maximum(nrm, 1e-12)
    if distance_metric == "euclidean":
        sq = jnp.sum(feat * feat, axis=1, keepdims=True)
        dist = sq + sq.T - 2.0 * feat @ feat.T
        dist = jnp.sqrt(jnp.clip(dist, 1e-12))
    else:
        nrm = jnp.sqrt(jnp.sum(feat * feat, axis=1, keepdims=True))
        fn = feat / jnp.maximum(nrm, 1e-12)
        dist = 1.0 - fn @ fn.T
    is_pos = labels[:, None] == labels[None, :]
    eye = jnp.eye(n, dtype=bool)
    dist_pos = jnp.where(is_pos & ~eye, dist, -jnp.inf)
    has_pos = jnp.sum(is_pos, axis=1) > 1
    dist_ap = jnp.where(has_pos, jnp.max(dist_pos, axis=1), 0.0)
    dist_neg = jnp.where(is_pos, jnp.inf, dist)
    has_neg = jnp.any(~is_pos, axis=1)
    dist_an = jnp.where(has_neg, jnp.min(dist_neg, axis=1), jnp.inf)
    if hard_factor > 0:
        dist_ap = dist_ap * (1.0 + hard_factor)
        dist_an = dist_an * (1.0 - hard_factor)
    return jnp.mean(jnp.maximum(dist_ap - dist_an + margin, 0.0))


if __name__ == "__main__":
    key = jax.random.PRNGKey(0)
    k1, k2, k3 = jax.random.split(key, 3)

    def check(got, want, name, tol=1e-4):
        got = float(got)
        want = float(want)
        assert abs(got - want) <= tol * max(1.0, abs(want)), (name, got, want)

    # Primary small shape: batch=8, feat_dim=32.
    feat = jax.random.normal(k1, (8, 32), dtype=jnp.float32)
    labels = jnp.array([0, 0, 1, 1, 0, 1, 0, 1], dtype=jnp.int32)

    # 1) euclidean, defaults
    out = jax.block_until_ready(triplet_loss(feat, labels))
    check(out, _reference_triplet_loss(feat, labels), "euclidean")

    # 2) normalized features + hard mining factor
    out = jax.block_until_ready(
        triplet_loss(feat, labels, normalize_feature=True, hard_factor=0.1))
    check(out,
          _reference_triplet_loss(feat, labels, normalize_feature=True,
                                  hard_factor=0.1),
          "normalize+hard_factor")

    # 3) cosine metric
    out = jax.block_until_ready(
        triplet_loss(feat, labels, distance_metric="cosine"))
    check(out,
          _reference_triplet_loss(feat, labels, distance_metric="cosine"),
          "cosine")

    # 4) single-class batch -> exactly 0 without any wrapper-side guard
    out = jax.block_until_ready(triplet_loss(feat, jnp.zeros((8,), jnp.int32)))
    check(out, 0.0, "single-class")

    # 5) multi-tile + padded grid path (n not a multiple of the row tile)
    feat2 = jax.random.normal(k2, (20, 32), dtype=jnp.float32)
    labels2 = jax.random.randint(k3, (20,), 0, 4, dtype=jnp.int32)
    out = jax.block_until_ready(triplet_loss(feat2, labels2, block_rows=8))
    check(out, _reference_triplet_loss(feat2, labels2), "multi-tile")

    print("KERNEL_OK")
</pallas_src>

<mosaic_0001>
module attributes {stable_mosaic.version = 11 : i64} {
  func.func @_triplet_kernel(%arg0: i32, %arg1: memref<8x32xf32, #tpu.memory_space<vmem>>, %arg2: memref<8x1xi32, #tpu.memory_space<vmem>>, %arg3: memref<1x8xi32, #tpu.memory_space<vmem>>, %arg4: memref<1x1xf32, #tpu.memory_space<smem>>, %arg5: memref<1x8xf32, #tpu.memory_space<vmem>>, %arg6: memref<1x1xf32, #tpu.memory_space<vmem>>) attributes {dimension_semantics = [#tpu.dimension_semantics<arbitrary>], iteration_bounds = array<i64: 1>, scalar_prefetch = 0 : i64, scratch_operands = 2 : i64, tpu.core_type = #tpu.core_type<tc>, window_params = [{pipeline_mode = #tpu.pipeline_mode<synchronous>, transform_indices = @transform_0, window_bounds = array<i64: 8, 32>}, {transform_indices = @transform_1, window_bounds = array<i64: 8, 1>}, {pipeline_mode = #tpu.pipeline_mode<synchronous>, transform_indices = @transform_2, window_bounds = array<i64: 1, 8>}, {transform_indices = @transform_3, window_bounds = array<i64: 1, 1>}]} {
    %c0_i32 = arith.constant 0 : i32
    %0 = arith.cmpi eq, %arg0, %c0_i32 : i32
    %1 = arith.extui %0 : i1 to i32
    %c0_i32_0 = arith.constant 0 : i32
    %2 = arith.cmpi ne, %1, %c0_i32_0 : i32
    scf.if %2 {
      %c0_32 = arith.constant 0 : index
      %c0_33 = arith.constant 0 : index
      %72 = vector.load %arg1[%c0_32, %c0_33] : memref<8x32xf32, #tpu.memory_space<vmem>>, vector<8x32xf32>
      %cst_34 = arith.constant 1.000000e+00 : f32
      %73 = vector.broadcast %cst_34 : f32 to vector<1x32xf32>
      %74 = arith.mulf %72, %72 : vector<8x32xf32>
      %cst_35 = arith.constant dense<0.000000e+00> : vector<1x8xf32>
      %75 = tpu.matmul %73, %74, %cst_35 {dimension_numbers = #tpu.dot_dimension_numbers<[1], [1], [0], [0], [0, 0, 1, 0], [], []>} : vector<1x32xf32>, vector<8x32xf32>, vector<1x8xf32> -> vector<1x8xf32>
      %c0_36 = arith.constant 0 : index
      %c0_37 = arith.constant 0 : index
      %76 = vector.load %arg5[%c0_36, %c0_37] : memref<1x8xf32, #tpu.memory_space<vmem>>, vector<1x8xf32>
      tpu.vector_store %arg5[%c0_36, %c0_37], %75 {strides = array<i32>} : memref<1x8xf32, #tpu.memory_space<vmem>>, vector<1x8xf32>,
      %cst_38 = arith.constant 0.000000e+00 : f32
      %77 = vector.broadcast %cst_38 : f32 to vector<1x1xf32>
      %c0_39 = arith.constant 0 : index
      %c0_40 = arith.constant 0 : index
      %78 = vector.load %arg6[%c0_39, %c0_40] : memref<1x1xf32, #tpu.memory_space<vmem>>, vector<1x1xf32>
      tpu.vector_store %arg6[%c0_39, %c0_40], %77 {strides = array<i32>} : memref<1x1xf32, #tpu.memory_space<vmem>>, vector<1x1xf32>,
    } else {
    }
    %c8_i32 = arith.constant 8 : i32
    %3 = arith.muli %arg0, %c8_i32 : i32
    %4 = tpu.assume_multiple %3, 8 : i32
    %5 = arith.index_cast %4 : i32 to index
    %c0 = arith.constant 0 : index
    %6 = vector.load %arg1[%5, %c0] : memref<8x32xf32, #tpu.memory_space<vmem>>, vector<8x32xf32>
    %c0_1 = arith.constant 0 : index
    %c0_2 = arith.constant 0 : index
    %7 = vector.load %arg1[%c0_1, %c0_2] : memref<8x32xf32, #tpu.memory_space<vmem>>, vector<8x32xf32>
    %cst = arith.constant dense<0.000000e+00> : vector<8x8xf32>
    %8 = tpu.matmul %6, %7, %cst {dimension_numbers = #tpu.dot_dimension_numbers<[1], [1], [0], [0], [0, 0, 1, 0], [], []>} : vector<8x32xf32>, vector<8x32xf32>, vector<8x8xf32> -> vector<8x8xf32>
    %9 = arith.mulf %6, %6 : vector<8x32xf32>
    %cst_3 = arith.constant dense<0.000000e+00> : vector<8xf32>
    %10 = vector.multi_reduction <add>, %9, %cst_3 [1] : vector<8x32xf32> to vector<8xf32>
    %11 = vector.shape_cast %10 : vector<8xf32> to vector<8x1xf32>
    %c0_4 = arith.constant 0 : index
    %c0_5 = arith.constant 0 : index
    %12 = vector.load %arg2[%c0_4, %c0_5] : memref<8x1xi32, #tpu.memory_space<vmem>>, vector<8x1xi32>
    %c0_6 = arith.constant 0 : index
    %c0_7 = arith.constant 0 : index
    %13 = vector.load %arg3[%c0_6, %c0_7] : memref<1x8xi32, #tpu.memory_space<vmem>>, vector<1x8xi32>
    %14 = vector.broadcast %12 : vector<8x1xi32> to vector<8x8xi32>
    %15 = vector.broadcast %13 : vector<1x8xi32> to vector<8x8xi32>
    %16 = arith.cmpi eq, %14, %15 : vector<8x8xi32>
    %c8_i32_8 = arith.constant 8 : i32
    %17 = arith.muli %arg0, %c8_i32_8 : i32
    %18 = tpu.iota {dimensions = array<i32: 0>} : vector<8x1xi32>
    %19 = vector.broadcast %17 : i32 to vector<8x1xi32>
    %20 = arith.addi %19, %18 : vector<8x1xi32>
    %21 = tpu.iota {dimensions = array<i32: 1>} : vector<1x8xi32>
    %22 = vector.broadcast %20 : vector<8x1xi32> to vector<8x8xi32>
    %23 = vector.broadcast %21 : vector<1x8xi32> to vector<8x8xi32>
    %24 = arith.cmpi eq, %22, %23 : vector<8x8xi32>
    %25 = arith.extui %16 : vector<8x8xi1> to vector<8x8xi32>
    %cst_9 = arith.constant dense<0> : vector<8xi32>
    %26 = vector.multi_reduction <add>, %25, %cst_9 [1] : vector<8x8xi32> to vector<8xi32>
    %27 = vector.shape_cast %26 : vector<8xi32> to vector<8x1xi32>
    %c1_i32 = arith.constant 1 : i32
    %28 = vector.broadcast %c1_i32 : i32 to vector<8x1xi32>
    %29 = arith.cmpi sgt, %27, %28 : vector<8x1xi32>
    %c8_i32_10 = arith.constant 8 : i32
    %30 = vector.broadcast %c8_i32_10 : i32 to vector<8x1xi32>
    %31 = arith.cmpi slt, %27, %30 : vector<8x1xi32>
    %c0_11 = arith.constant 0 : index
    %c0_12 = arith.constant 0 : index
    %32 = vector.load %arg5[%c0_11, %c0_12] : memref<1x8xf32, #tpu.memory_space<vmem>>, vector<1x8xf32>
    %cst_13 = arith.constant 2.000000e+00 : f32
    %33 = vector.broadcast %cst_13 : f32 to vector<8x8xf32>
    %34 = arith.mulf %33, %8 : vector<8x8xf32>
    %35 = vector.broadcast %32 : vector<1x8xf32> to vector<8x8xf32>
    %36 = arith.subf %35, %34 : vector<8x8xf32>
    %37 = vector.broadcast %11 : vector<8x1xf32> to vector<8x8xf32>
    %38 = arith.addf %36, %37 : vector<8x8xf32>
    %cst_14 = arith.constant dense<true> : vector<8x8xi1>
    %39 = arith.xori %24, %cst_14 : vector<8x8xi1>
    %40 = arith.andi %16, %39 : vector<8x8xi1>
    %cst_15 = arith.constant 0xFF800000 : f32
    %41 = vector.broadcast %cst_15 : f32 to vector<8x8xf32>
    %42 = arith.select %40, %38, %41 : vector<8x8xi1>, vector<8x8xf32>
    %cst_16 = arith.constant dense<0xFF800000> : vector<8xf32>
    %43 = vector.multi_reduction <maximumf>, %42, %cst_16 [1] : vector<8x8xf32> to vector<8xf32>
    %44 = vector.shape_cast %43 : vector<8xf32> to vector<8x1xf32>
    %cst_17 = arith.constant 0x7F800000 : f32
    %45 = vector.broadcast %cst_17 : f32 to vector<8x8xf32>
    %46 = arith.select %16, %45, %38 : vector<8x8xi1>, vector<8x8xf32>
    %cst_18 = arith.constant dense<0x7F800000> : vector<8xf32>
    %47 = vector.multi_reduction <minimumf>, %46, %cst_18 [1] : vector<8x8xf32> to vector<8xf32>
    %48 = vector.shape_cast %47 : vector<8xf32> to vector<8x1xf32>
    %cst_19 = arith.constant 9.99999996E-13 : f32
    %49 = vector.broadcast %cst_19 : f32 to vector<8x1xf32>
    %50 = arith.maximumf %44, %49 : vector<8x1xf32>
    %51 = math.sqrt %50 : vector<8x1xf32>
    %cst_20 = arith.constant 0.000000e+00 : f32
    %52 = vector.broadcast %cst_20 : f32 to vector<8x1xf32>
    %53 = arith.select %29, %51, %52 : vector<8x1xi1>, vector<8x1xf32>
    %cst_21 = arith.constant 9.99999996E-13 : f32
    %54 = vector.broadcast %cst_21 : f32 to vector<8x1xf32>
    %55 = arith.maximumf %48, %54 : vector<8x1xf32>
    %56 = math.sqrt %55 : vector<8x1xf32>
    %cst_22 = arith.constant 0x7F800000 : f32
    %57 = vector.broadcast %cst_22 : f32 to vector<8x1xf32>
    %58 = arith.select %31, %56, %57 : vector<8x1xi1>, vector<8x1xf32>
    %59 = arith.subf %53, %58 : vector<8x1xf32>
    %cst_23 = arith.constant 3.000000e-01 : f32
    %60 = vector.broadcast %cst_23 : f32 to vector<8x1xf32>
    %61 = arith.addf %59, %60 : vector<8x1xf32>
    %cst_24 = arith.constant 0.000000e+00 : f32
    %62 = vector.broadcast %cst_24 : f32 to vector<8x1xf32>
    %63 = arith.maximumf %61, %62 : vector<8x1xf32>
    %c0_25 = arith.constant 0 : index
    %c0_26 = arith.constant 0 : index
    %64 = vector.load %arg6[%c0_25, %c0_26] : memref<1x1xf32, #tpu.memory_space<vmem>>, vector<1x1xf32>
    %cst_27 = arith.constant dense<0.000000e+00> : vector<1xf32>
    %65 = vector.multi_reduction <add>, %63, %cst_27 [0] : vector<8x1xf32> to vector<1xf32>
    %66 = vector.shape_cast %65 : vector<1xf32> to vector<1x1xf32>
    %67 = arith.addf %64, %66 : vector<1x1xf32>
    %c0_28 = arith.constant 0 : index
    %c0_29 = arith.constant 0 : index
    %68 = vector.load %arg6[%c0_28, %c0_29] : memref<1x1xf32, #tpu.memory_space<vmem>>, vector<1x1xf32>
    tpu.vector_store %arg6[%c0_28, %c0_29], %67 {strides = array<i32>} : memref<1x1xf32, #tpu.memory_space<vmem>>, vector<1x1xf32>,
    %c0_i32_30 = arith.constant 0 : i32
    %69 = arith.cmpi eq, %arg0, %c0_i32_30 : i32
    %70 = arith.extui %69 : i1 to i32
    %c0_i32_31 = arith.constant 0 : i32
    %71 = arith.cmpi ne, %70, %c0_i32_31 : i32
    scf.if %71 {
      %c0_32 = arith.constant 0 : index
      %c0_33 = arith.constant 0 : index
      %72 = vector.load %arg6[%c0_32, %c0_33] : memref<1x1xf32, #tpu.memory_space<vmem>>, vector<1x1xf32>
      %73 = vector.extract %72[0, 0] : f32 from vector<1x1xf32>
      %cst_34 = arith.constant 1.250000e-01 : f32
      %74 = arith.mulf %73, %cst_34 : f32
      %c0_35 = arith.constant 0 : index
      %c0_36 = arith.constant 0 : index
      %75 = memref.load %arg4[%c0_35, %c0_36] : memref<1x1xf32, #tpu.memory_space<smem>>
      memref.store %74, %arg4[%c0_35, %c0_36] : memref<1x1xf32, #tpu.memory_space<smem>>
    } else {
    }
    return
  }
  func.func @transform_0(%arg0: i32) -> (i32, i32) {
    %c0_i32 = arith.constant 0 : i32
    %c0_i32_0 = arith.constant 0 : i32
    %c0_i32_1 = arith.constant 0 : i32
    return %c0_i32, %c0_i32_0 : i32, i32
  }
  func.func @transform_1(%arg0: i32) -> (i32, i32) {
    %c0_i32 = arith.constant 0 : i32
    %c0_i32_0 = arith.constant 0 : i32
    return %arg0, %c0_i32 : i32, i32
  }
  func.func @transform_2(%arg0: i32) -> (i32, i32) {
    %c0_i32 = arith.constant 0 : i32
    %c0_i32_0 = arith.constant 0 : i32
    %c0_i32_1 = arith.constant 0 : i32
    return %c0_i32, %c0_i32_0 : i32, i32
  }
  func.func @transform_3(%arg0: i32) -> (i32, i32) {
    %c0_i32 = arith.constant 0 : i32
    %c0_i32_0 = arith.constant 0 : i32
    %c0_i32_1 = arith.constant 0 : i32
    return %c0_i32, %c0_i32_0 : i32, i32
  }
}

</mosaic_0001>

<llo_original>
// kernel: tpu_custom_call.1
$region0: #{tpu_custom_call.1}
  #allocation0 [shape = 'u32[]', space=smem, size = 0x4, offset = 0x4, fixed_abs, tag = 'smem constant byte address 0x4 - core index']
  #allocation1 [shape = 'u32[144,128]{1,0:T(1,128)}', space=vmem, size = 0x12000, scoped, tag = 'internal scratch']
  #allocation2 [shape = 'f32[1,8]{1,0:T(1,128)}', space=vmem, size = 0x200, scoped, tag = 'scratch operand']
  #allocation3 [shape = 'f32[1,1]{1,0:T(1,128)}', space=vmem, size = 0x200, scoped, tag = 'scratch operand']
  %s0 = inlined_call_operand.vmem [shape: f32[8,32], index: 0, kind: input, shape index: {}]
  %s1 = inlined_call_operand.vmem [shape: s32[8,1], index: 1, kind: input, shape index: {}]
  %s2 = inlined_call_operand.vmem [shape: s32[1,8], index: 2, kind: input, shape index: {}]
  %s3 = inlined_call_operand.hbm [shape: f32[1,1], index: 3, kind: output, shape index: {}]
  %s4 = sld [smem:[#allocation0]]
  $region30: #{tpu_custom_call.1} parent=0
    _
  %s6 = ssub.s32 1, %s4
  %s7 = scalar_select 0, %s6, %s4
  $region1: #{tpu_custom_call.1} parent=0
    #allocation4 [shape = 'u8[512]{0}', space=smem, size = 0x200, scoped, tag = 'output window, operand 0, single buffered']
    #allocation5 [shape = 's32[1]{0}', space=sflag, size = 0x4, scoped, tag = 'scoped memory for tpu_custom_call.1']
    %8 = vsyncpa [#allocation5], 0
    // Predicated region
    $region2: #{tpu_custom_call.1} parent=1 // pred_check
      _
    $region3: #{tpu_custom_call.1} parent=1 // pred_check_branch
      %10 = sbr.rel (0) target = $region5
    $region4: #{tpu_custom_call.1} parent=1 // pred_region
      _
    $region5: #{tpu_custom_call.1} parent=1 // pred_fallthru
      _
    // Predicated region
    $region6: #{tpu_custom_call.1} parent=1 // pred_check
      _
    $region7: #{tpu_custom_call.1} parent=1 // pred_check_branch
      %12 = sbr.rel (0) target = $region9
    $region8: #{tpu_custom_call.1} parent=1 // pred_region
      _
    $region9: #{tpu_custom_call.1} parent=1 // pred_fallthru
      _
    // Predicated region
    $region10: #{tpu_custom_call.1} parent=1 // pred_check
      _
    $region11: #{tpu_custom_call.1} parent=1 // pred_check_branch
      %14 = sbr.rel (0) target = $region13
    $region12: #{tpu_custom_call.1} parent=1 // pred_region
      _
    $region13: #{tpu_custom_call.1} parent=1 // pred_fallthru
      _
    %p15 = scmp.eq.s32.totalorder 0, 0
    // Predicated region
    $region14: #{tpu_custom_call.1} parent=1 // pred_check
      %p16 = pneg %p15
    $region15: #{tpu_custom_call.1} parent=1 // pred_check_branch
      %18 = sbr.rel (%p16) target = $region17
    $region16: #{tpu_custom_call.1} parent=1 // pred_region
      %v19 = vld [vmem:[%s0] sm:$0xff]
      %v20 = vmul.f32 %v19, %v19
      %vm21 = vcmask 261120
      %v23 = vsel %vm21, 1.0, 0
      %v26 = vsel %vm21, %v20, 0
      %28 = vmatprep.subr.mxu0 0.0
      %29 = vmatpush1.xpose.msra.mxu0 %v26
      %30 = vmatprep.subr.mxu0 0.0
      %31 = vmatpush1.xpose.msra.mxu0 0.0
      %32 = vmatprep.subr.mxu0 0.0
      %33 = vmatpush1.xpose.msra.mxu0 0.0
      %34 = vmatprep.subr.mxu0 0.0
      %35 = vmatpush1.xpose.msra.mxu0 0.0
      %36 = vmatprep.subr.mxu0 0.0
      %37 = vmatpush1.xpose.msra.mxu0 0.0
      %38 = vmatprep.subr.mxu0 0.0
      %39 = vmatpush1.xpose.msra.mxu0 0.0
      %40 = vmatprep.subr.mxu0 0.0
      %41 = vmatpush1.xpose.msra.mxu0 0.0
      %42 = vmatprep.subr.mxu0 0.0
      %43 = vmatpush1.xpose.msra.mxu0 0.0
      %44 = vmatprep.subr.mxu0 0.0
      %45 = vmatpush1.xpose.msra.mxu0 0.0
      %46 = vmatprep.subr.mxu0 0.0
      %47 = vmatpush1.xpose.msra.mxu0 0.0
      %48 = vmatprep.subr.mxu0 0.0
      %49 = vmatpush1.xpose.msra.mxu0 0.0
      %50 = vmatprep.subr.mxu0 0.0
      %51 = vmatpush1.xpose.msra.mxu0 0.0
      %52 = vmatprep.subr.mxu0 0.0
      %53 = vmatpush1.xpose.msra.mxu0 0.0
      %54 = vmatprep.subr.mxu0 0.0
      %55 = vmatpush1.xpose.msra.mxu0 0.0
      %56 = vmatprep.subr.mxu0 0.0
      %57 = vmatpush1.xpose.msra.mxu0 0.0
      %58 = vmatprep.subr.mxu0 0.0
      %59 = vmatpush1.xpose.msra.mxu0 0.0
      %60 = vmatprep.subr.mxu0 0.0
      %61 = vmatpush1.xpose.msra.mxu0 0.0
      %62 = vmatprep.subr.mxu0 0.0
      %63 = vmatpush1.xpose.msra.mxu0 0.0
      %64 = vmatprep.subr.mxu0 0.0
      %65 = vmatpush1.xpose.msra.mxu0 0.0
      %66 = vmatprep.subr.mxu0 0.0
      %67 = vmatpush1.xpose.msra.mxu0 0.0
      %68 = vmatprep.subr.mxu0 0.0
      %69 = vmatpush1.xpose.msra.mxu0 0.0
      %70 = vmatprep.subr.mxu0 0.0
      %71 = vmatpush1.xpose.msra.mxu0 0.0
      %72 = vmatprep.subr.mxu0 0.0
      %73 = vmatpush1.xpose.msra.mxu0 0.0
      %74 = vmatprep.subr.mxu0 0.0
      %75 = vmatpush1.xpose.msra.mxu0 0.0
      %76 = vmatprep.subr.mxu0 0.0
      %77 = vmatpush1.xpose.msra.mxu0 0.0
      %78 = vmatprep.subr.mxu0 0.0
      %79 = vmatpush1.xpose.msra.mxu0 0.0
      %80 = vmatprep.subr.mxu0 0.0
      %81 = vmatpush1.xpose.msra.mxu0 0.0
      %82 = vmatprep.subr.mxu0 0.0
      %83 = vmatpush1.xpose.msra.mxu0 0.0
      %84 = vmatprep.subr.mxu0 0.0
      %85 = vmatpush1.xpose.msra.mxu0 0.0
      %86 = vmatprep.subr.mxu0 0.0
      %87 = vmatpush1.xpose.msra.mxu0 0.0
      %88 = vmatprep.subr.mxu0 0.0
      %89 = vmatpush1.xpose.msra.mxu0 0.0
      %90 = vmatprep.subr.mxu0 0.0
      %91 = vmatpush1.xpose.msra.mxu0 0.0
      %92 = vmatprep.mubr.f32.mxu0 0.0
      %93 = vmatmul.mubr.f32.gmra.mrb[0].mxu0 %v23
      %v94 = vpop.f32.mrb[0].mxu0
      %v95 = vadd.f32 0.0, %v94
      %v96 = vpop.f32.mrb[0].mxu0
      %97 = vdwg.mxu0
      %vm98 = vcmask 57344
      %99 = vst.msk [vmem:[#allocation2] sm:$0x1] %vm98, %v95
      %vm100 = vcmask 0
      %101 = vst.msk [vmem:[#allocation3] sm:$0x1] %vm100, 0.0
    $region17: #{tpu_custom_call.1} parent=1 // pred_fallthru
      _
    %s102 = smul.u32 0, 8
    %s103 = scalar_lea.vmem %s0, %s102
    %v104 = vld [vmem:[%s103] sm:$0xff]
    %v105 = vld [vmem:[%s0] sm:$0xff]
    %vm106 = vcmask 261120
    %v108 = vsel %vm106, %v104, 0
    %v111 = vsel %vm106, %v105, 0
    %113 = vmatprep.subr.mxu0 0.0
    %114 = vmatpush1.xpose.msra.mxu0 %v111
    %115 = vmatprep.subr.mxu0 0.0
    %116 = vmatpush1.xpose.msra.mxu0 0.0
    %117 = vmatprep.subr.mxu0 0.0
    %118 = vmatpush1.xpose.msra.mxu0 0.0
    %119 = vmatprep.subr.mxu0 0.0
    %120 = vmatpush1.xpose.msra.mxu0 0.0
    %121 = vmatprep.subr.mxu0 0.0
    %122 = vmatpush1.xpose.msra.mxu0 0.0
    %123 = vmatprep.subr.mxu0 0.0
    %124 = vmatpush1.xpose.msra.mxu0 0.0
    %125 = vmatprep.subr.mxu0 0.0
    %126 = vmatpush1.xpose.msra.mxu0 0.0
    %127 = vmatprep.subr.mxu0 0.0
    %128 = vmatpush1.xpose.msra.mxu0 0.0
    %129 = vmatprep.subr.mxu0 0.0
    %130 = vmatpush1.xpose.msra.mxu0 0.0
    %131 = vmatprep.subr.mxu0 0.0
    %132 = vmatpush1.xpose.msra.mxu0 0.0
    %133 = vmatprep.subr.mxu0 0.0
    %134 = vmatpush1.xpose.msra.mxu0 0.0
    %135 = vmatprep.subr.mxu0 0.0
    %136 = vmatpush1.xpose.msra.mxu0 0.0
    %137 = vmatprep.subr.mxu0 0.0
    %138 = vmatpush1.xpose.msra.mxu0 0.0
    %139 = vmatprep.subr.mxu0 0.0
    %140 = vmatpush1.xpose.msra.mxu0 0.0
    %141 = vmatprep.subr.mxu0 0.0
    %142 = vmatpush1.xpose.msra.mxu0 0.0
    %143 = vmatprep.subr.mxu0 0.0
    %144 = vmatpush1.xpose.msra.mxu0 0.0
    %145 = vmatprep.subr.mxu0 0.0
    %146 = vmatpush1.xpose.msra.mxu0 0.0
    %147 = vmatprep.subr.mxu0 0.0
    %148 = vmatpush1.xpose.msra.mxu0 0.0
    %149 = vmatprep.subr.mxu0 0.0
    %150 = vmatpush1.xpose.msra.mxu0 0.0
    %151 = vmatprep.subr.mxu0 0.0
    %152 = vmatpush1.xpose.msra.mxu0 0.0
    %153 = vmatprep.subr.mxu0 0.0
    %154 = vmatpush1.xpose.msra.mxu0 0.0
    %155 = vmatprep.subr.mxu0 0.0
    %156 = vmatpush1.xpose.msra.mxu0 0.0
    %157 = vmatprep.subr.mxu0 0.0
    %158 = vmatpush1.xpose.msra.mxu0 0.0
    %159 = vmatprep.subr.mxu0 0.0
    %160 = vmatpush1.xpose.msra.mxu0 0.0
    %161 = vmatprep.subr.mxu0 0.0
    %162 = vmatpush1.xpose.msra.mxu0 0.0
    %163 = vmatprep.subr.mxu0 0.0
    %164 = vmatpush1.xpose.msra.mxu0 0.0
    %165 = vmatprep.subr.mxu0 0.0
    %166 = vmatpush1.xpose.msra.mxu0 0.0
    %167 = vmatprep.subr.mxu0 0.0
    %168 = vmatpush1.xpose.msra.mxu0 0.0
    %169 = vmatprep.subr.mxu0 0.0
    %170 = vmatpush1.xpose.msra.mxu0 0.0
    %171 = vmatprep.subr.mxu0 0.0
    %172 = vmatpush1.xpose.msra.mxu0 0.0
    %173 = vmatprep.subr.mxu0 0.0
    %174 = vmatpush1.xpose.msra.mxu0 0.0
    %175 = vmatprep.subr.mxu0 0.0
    %176 = vmatpush1.xpose.msra.mxu0 0.0
    %177 = vmatprep.mubr.f32.mxu0 0.0
    %178 = vmatmul.mubr.f32.gmra.mrb[0].mxu0 %v108
    %v179 = vpop.f32.mrb[0].mxu0
    %v180 = vadd.f32 0.0, %v179
    %v181 = vpop.f32.mrb[0].mxu0
    %182 = vdwg.mxu0
    %v183 = vmul.f32 %v104, %v104
    %v184 = vsel %vm106, %v183, 0.0
    %185 = vadd.xlane.f32.xlu0 %v184
    %v186 = vpop.xlane.xlu0 %185
    %v187 = vld [vmem:[%s1] sm:$0xff]
    %v188 = vld [vmem:[%s2] sm:$0x1]
    %189 = vset.pattern.permute.xlu0 0
    %190 = vperm.xlu0 %189, %v187
    %v191 = vpop.permute.xlu0 %190
    %v192 = vlaneseq
    %v193 = vshrl.u32 %v192, 7
    %v194 = vsub.s32 0, %v193
    %v195 = vrot.slane %v188, %v194
    %vm196 = vcmp.eq.s32.totalorder %v191, %v195
    %v197 = vlaneseq
    %v198 = vshrl.u32 %v197, 7
    %v199 = vstv %s102
    %v200 = vadd.s32 %v199, %v198
    %v201 = vlaneseq
    %v202 = vand.u32 %v201, 127
    %vm203 = vcmp.eq.s32.totalorder %v200, %v202
    %v204 = vsel %vm196, 1, 0
    %vm205 = vcmask 64512
    %v206 = vsel %vm205, %v204, 0
    %v207 = vand.u32 %v206, 65535
    %v208 = vshrl.u32 %v206, 16
    %v209 = vcvt.s32.f32 %v207
    %v210 = vcvt.s32.f32 %v208
    %211 = vadd.xlane.f32.xlu0 %v209
    %v212 = vpop.xlane.xlu0 %211
    %213 = vadd.xlane.f32.xlu0 %v210
    %v214 = vpop.xlane.xlu0 %213
    %v215 = vcvt.f32.s32 %v212
    %v216 = vcvt.f32.s32 %v214
    %v217 = vshll.u32 %v216, 16
    %v218 = vadd.s32 %v217, %v215
    %vm219 = vcmp.gt.s32.totalorder %v218, 1
    %vm220 = vcmp.lt.s32.totalorder %v218, 8
    %v221 = vld [vmem:[#allocation2] sm:$0x1]
    %v222 = vmul.f32 %v180, 2.0
    %v224 = vlaneseq
    %v225 = vshrl.u32 %v224, 7
    %v226 = vsub.s32 0, %v225
    %v227 = vrot.slane %v221, %v226
    %v229 = vsub.f32 %v227, %v222
    %v230 = vadd.f32 %v229, %v186
    %vm231 = vmxor %vm203, 1
    %vm232 = vmand %vm196, %vm231
    %v233 = vsel %vm232, %v230, -inf
    %v234 = vsel %vm205, %v233, -inf
    %235 = vmax.xlane.f32.xlu0 %v234
    %v236 = vpop.xlane.xlu0 %235
    %v237 = vsel %vm196, inf, %v230
    %v238 = vsel %vm205, %v237, inf
    %239 = vmin.xlane.f32.xlu0 %v238
    %v240 = vpop.xlane.xlu0 %239
    %v241 = vmax.f32 %v236, 1e-12
    %v242 = vrsqrt.pop %v241
    %v243 = vmul.f32 %v241, %v242
    %vm244 = vcmp.eq.f32.partialorder %v241, inf
    %v245 = vsel %vm244, %v241, %v243
    %vm246 = vcmp.eq.f32.partialorder %v241, 0.0
    %v247 = vand.u32 %v241, 2147483648
    %v248 = vsel %vm246, %v247, %v245
    %v249 = vsel %vm219, %v248, 0.0
    %v250 = vmax.f32 %v240, 1e-12
    %v251 = vrsqrt.pop %v250
    %v252 = vmul.f32 %v250, %v251
    %vm253 = vcmp.eq.f32.partialorder %v250, inf
    %v254 = vsel %vm253, %v250, %v252
    %vm255 = vcmp.eq.f32.partialorder %v250, 0.0
    %v256 = vand.u32 %v250, 2147483648
    %v257 = vsel %vm255, %v256, %v254
    %v258 = vsel %vm220, %v257, inf
    %v259 = vsub.f32 %v249, %v258
    %v260 = vadd.f32 %v259, 0.3
    %v261 = vmax.f32 %v260, 0.0
    %v262 = vld [vmem:[#allocation3] sm:$0x1]
    %v263 = vrot.slane %v261, 4
    %v264 = vadd.f32 %v261, %v263
    %v265 = vrot.slane %v264, 2
    %v266 = vadd.f32 %v264, %v265
    %v267 = vrot.slane %v266, 1
    %v268 = vadd.f32 %v266, %v267
    %v269 = vadd.f32 %v262, %v268
    %vm270 = vcmask 0
    %271 = vst.msk [vmem:[#allocation3] sm:$0x1] %vm270, %v269
    // Predicated region
    $region18: #{tpu_custom_call.1} parent=1 // pred_check
      %p272 = pneg %p15
    $region19: #{tpu_custom_call.1} parent=1 // pred_check_branch
      %274 = sbr.rel (%p272) target = $region21
    $region20: #{tpu_custom_call.1} parent=1 // pred_region
      %v275 = vld [vmem:[#allocation3] sm:$0x1]
      %s276 = vtos %v275
      %s277 = smul.f32 %s276, 0.125
      %s278 = scalar_lea.smem [#allocation4], 0
      %279 = sst [smem:[%s278]] %s277
    $region21: #{tpu_custom_call.1} parent=1 // pred_fallthru
      _
    // Predicated region
    $region22: #{tpu_custom_call.1} parent=1 // pred_check
      _
    $region23: #{tpu_custom_call.1} parent=1 // pred_check_branch
      %281 = sbr.rel (0) target = $region25
    $region24: #{tpu_custom_call.1} parent=1 // pred_region
      %s283 = ssub.s32 16, 16
      %284 = vsyncadd [#allocation5], %s283
      %287 = dma.smem_to_hbm [#allocation4], 16, %s3, [#allocation5]
    $region25: #{tpu_custom_call.1} parent=1 // pred_fallthru
      _
    // Predicated region
    $region26: #{tpu_custom_call.1} parent=1 // pred_check
      _
    $region27: #{tpu_custom_call.1} parent=1 // pred_check_branch
      %289 = sbr.rel (0) target = $region29
    $region28: #{tpu_custom_call.1} parent=1 // pred_region
      %290 = dma.done [#allocation5], 16
    $region29: #{tpu_custom_call.1} parent=1 // pred_fallthru
      _
    %291 = sfence
    %292 = vsyncpa [#allocation5], 1

</llo_original>
